<compile_context>
chip_gen: v5e
topology: v5e:2x2
jax: 0.10.0
libtpu: 0.0.40
codegen_flags: <defaults>
</compile_context>

<pallas_src>
import jax
import jax.numpy as jnp
from jax.experimental import pallas as pl
from jax.experimental.pallas import tpu as pltpu


def _round_up(x, m):
    return ((x + m - 1) // m) * m


def _normalize_tile(tm, batch):
    """Clamp a requested row tile to [16, round_up(batch, 16)], multiple of 16."""
    tm = min(int(tm), _round_up(batch, 16))
    return max(16, _round_up(tm, 16))


def _default_tile(batch, tm_max=4096, min_steps=8):
    # >= min_steps grid steps keeps the "parallel" split across v7x's 2 TensorCores
    # balanced; TM <= 4096 keeps double-buffered output tiles + f32 temps well under
    # v7x's 64 MiB per-TC VMEM (v5e/v6e have 128 MiB, so also fine).
    guess = -(-batch // min_steps)
    return _normalize_tile(min(tm_max, max(16, guess)), batch)


_COMPILER_PARAMS = pltpu.CompilerParams(
    dimension_semantics=("parallel",),       # rows (edges) are independent
    vmem_limit_bytes=48 * 1024 * 1024,       # > v5e 16 MiB default, < v7x 64 MiB physical
)


# ---------------------------------------------------------------------------
# Standalone EdgeModel: tanh(x @ W1 + b1) @ W2 + b2  ->  [B, N*N]
# ---------------------------------------------------------------------------
def _edge_model_kernel(x_ref, w1_ref, b1_ref, w2_ref, b2_ref, o_ref):
    # Cast the streamed f32 rows to bf16 in-kernel (no extra wrapper HBM pass);
    # MXU accumulates in f32, bias add + tanh stay f32 (safe on v5e: no bf16 VPU/EUP).
    h = jnp.dot(x_ref[...].astype(jnp.bfloat16), w1_ref[...],
                preferred_element_type=jnp.float32)
    h = jnp.tanh(h + b1_ref[...])
    out = jnp.dot(h.astype(jnp.bfloat16), w2_ref[...],
                  preferred_element_type=jnp.float32)
    o_ref[...] = (out + b2_ref[...]).astype(o_ref.dtype)


def edge_model_forward(x, w1, b1, w2, b2, *, tm=None, out_dtype=jnp.bfloat16):
    """EdgeModel forward. x: [B, E]; W1: [E, N]; b1: [1, N]; W2: [N, N*N]; b2: [1, N*N]."""
    B, E = x.shape
    N = w1.shape[1]
    NN = w2.shape[1]
    assert w1.shape == (E, N) and b1.shape == (1, N)
    assert w2.shape == (N, NN) and b2.shape == (1, NN)

    TM = _default_tile(B) if tm is None else _normalize_tile(tm, B)
    grid = (pl.cdiv(B, TM),)   # exact out_shape; Pallas masks the partial last block

    return pl.pallas_call(
        _edge_model_kernel,
        out_shape=jax.ShapeDtypeStruct((B, NN), out_dtype),
        grid_spec=pltpu.PrefetchScalarGridSpec(
            num_scalar_prefetch=0,
            grid=grid,
            in_specs=[
                pl.BlockSpec((TM, E), lambda i: (i, 0)),   # streamed f32 rows
                pl.BlockSpec((E, N), lambda i: (0, 0)),    # VMEM-resident bf16 weight
                pl.BlockSpec((1, N), lambda i: (0, 0)),    # f32 bias
                pl.BlockSpec((N, NN), lambda i: (0, 0)),   # VMEM-resident bf16 weight
                pl.BlockSpec((1, NN), lambda i: (0, 0)),   # f32 bias
            ],
            out_specs=pl.BlockSpec((TM, NN), lambda i: (i, 0)),
        ),
        compiler_params=_COMPILER_PARAMS,
    )(x, w1.astype(jnp.bfloat16), b1.astype(jnp.float32),
      w2.astype(jnp.bfloat16), b2.astype(jnp.float32))


# ---------------------------------------------------------------------------
# Fused EdgeModel + NNConv per-edge message (the [B, N*N] tensor never hits HBM)
# ---------------------------------------------------------------------------
def _edge_message_kernel(ea_ref, xs_ref, w1_ref, b1_ref, w2_ref, b2_ref, o_ref):
    n = xs_ref.shape[-1]
    h = jnp.dot(ea_ref[...].astype(jnp.bfloat16), w1_ref[...],
                preferred_element_type=jnp.float32)
    h = jnp.tanh(h + b1_ref[...])
    # Per-edge NNConv weight matrices, kept entirely in VMEM: [TM, N*N] f32.
    w_full = jnp.dot(h.astype(jnp.bfloat16), w2_ref[...],
                     preferred_element_type=jnp.float32) + b2_ref[...]
    xs = xs_ref[...].astype(jnp.float32)
    # msg_e = x_src[e] @ reshape(w_full[e], (N, N)); unrolled over the tiny static
    # contraction dim with 2-D lane slices (keeps Mosaic lowering simple).
    acc = xs[:, 0:1] * w_full[:, 0:n]
    for k in range(1, n):
        acc = acc + xs[:, k:k + 1] * w_full[:, k * n:(k + 1) * n]
    o_ref[...] = acc.astype(o_ref.dtype)


def nnconv_edge_messages(x_nodes, edge_src, edge_attr, w1, b1, w2, b2, *,
                         tm=None, out_dtype=jnp.float32):
    """Fused per-edge message: msg[e] = x_nodes[edge_src[e]] @ EdgeModel(edge_attr[e]).view(N, N)."""
    B, E = edge_attr.shape
    N = w1.shape[1]
    NN = w2.shape[1]
    assert x_nodes.shape[1] == N and NN == N * N

    # Cheap XLA gather of the source-node rows ([B, N]).
    # TODO(synk): move this gather in-kernel (scalar-prefetched edge_src + pl.Element /
    # manual DMA) if the [B, N] gather ever shows up in a profile.
    x_src = jnp.take(x_nodes, edge_src, axis=0).astype(jnp.float32)

    TM = _default_tile(B) if tm is None else _normalize_tile(tm, B)
    grid = (pl.cdiv(B, TM),)

    return pl.pallas_call(
        _edge_message_kernel,
        out_shape=jax.ShapeDtypeStruct((B, N), out_dtype),
        grid_spec=pltpu.PrefetchScalarGridSpec(
            num_scalar_prefetch=0,
            grid=grid,
            in_specs=[
                pl.BlockSpec((TM, E), lambda i: (i, 0)),   # edge_attr rows (f32)
                pl.BlockSpec((TM, N), lambda i: (i, 0)),   # gathered source-node rows
                pl.BlockSpec((E, N), lambda i: (0, 0)),
                pl.BlockSpec((1, N), lambda i: (0, 0)),
                pl.BlockSpec((N, NN), lambda i: (0, 0)),
                pl.BlockSpec((1, NN), lambda i: (0, 0)),
            ],
            out_specs=pl.BlockSpec((TM, N), lambda i: (i, 0)),
        ),
        compiler_params=_COMPILER_PARAMS,
    )(edge_attr, x_src, w1.astype(jnp.bfloat16), b1.astype(jnp.float32),
      w2.astype(jnp.bfloat16), b2.astype(jnp.float32))


def init_params(key, num_edge_features, num_node_features, dtype=jnp.float32):
    """torch.nn.Linear-style U(-1/sqrt(fan_in), 1/sqrt(fan_in)) init."""
    E, N = num_edge_features, num_node_features
    NN = N * N
    k1, k2, k3, k4 = jax.random.split(key, 4)
    bound1 = 1.0 / jnp.sqrt(E)
    bound2 = 1.0 / jnp.sqrt(N)
    w1 = jax.random.uniform(k1, (E, N), dtype, -bound1, bound1)
    b1 = jax.random.uniform(k2, (1, N), dtype, -bound1, bound1)
    w2 = jax.random.uniform(k3, (N, NN), dtype, -bound2, bound2)
    b2 = jax.random.uniform(k4, (1, NN), dtype, -bound2, bound2)
    return w1, b1, w2, b2


if __name__ == "__main__":
    key = jax.random.PRNGKey(0)
    num_edge_features = 8
    num_node_features = 16          # EdgeModel output dim = 16*16 = 256
    num_nodes = 24
    num_edges = 40                  # not a multiple of the tile -> exercises partial blocks

    ka, kx, ks, kp = jax.random.split(key, 4)
    edge_attr = jax.random.normal(ka, (num_edges, num_edge_features), jnp.float32)
    x_nodes = jax.random.normal(kx, (num_nodes, num_node_features), jnp.float32)
    edge_src = jax.random.randint(ks, (num_edges,), 0, num_nodes)
    w1, b1, w2, b2 = init_params(kp, num_edge_features, num_node_features)
    N = num_node_features
    NN = N * N

    # Full-f32 reference.
    h_ref = jnp.tanh(jnp.dot(edge_attr, w1, precision="highest") + b1)
    ew_ref = jnp.dot(h_ref, w2, precision="highest") + b2                      # [B, N*N]
    x_src_ref = x_nodes[edge_src]                                              # [B, N]
    msg_ref = jnp.einsum("bk,bkn->bn", x_src_ref,
                         ew_ref.reshape(num_edges, N, N), precision="highest")

    # Reference with the same bf16 rounding of the MXU inputs (tight check).
    eb = edge_attr.astype(jnp.bfloat16).astype(jnp.float32)
    w1b = w1.astype(jnp.bfloat16).astype(jnp.float32)
    w2b = w2.astype(jnp.bfloat16).astype(jnp.float32)
    h_b = jnp.tanh(jnp.dot(eb, w1b, precision="highest") + b1)
    ew_b = jnp.dot(h_b.astype(jnp.bfloat16).astype(jnp.float32), w2b,
                   precision="highest") + b2
    msg_b = jnp.einsum("bk,bkn->bn", x_src_ref,
                       ew_b.reshape(num_edges, N, N), precision="highest")

    # Standalone EdgeModel kernel: default bf16 output, TM=16 -> grid of 3 (partial last block).
    out = jax.block_until_ready(edge_model_forward(edge_attr, w1, b1, w2, b2))
    # Same kernel, f32 output, single partial block (TM rounds to 48 > B).
    out_big = jax.block_until_ready(
        edge_model_forward(edge_attr, w1, b1, w2, b2, tm=64, out_dtype=jnp.float32))
    # Fused EdgeModel + NNConv per-edge message kernel.
    msg = jax.block_until_ready(
        nnconv_edge_messages(x_nodes, edge_src, edge_attr, w1, b1, w2, b2))

    assert out.shape == (num_edges, NN) and out.dtype == jnp.bfloat16
    assert out_big.shape == (num_edges, NN) and out_big.dtype == jnp.float32
    assert msg.shape == (num_edges, N) and msg.dtype == jnp.float32

    # Tight checks vs the bf16-rounded reference.
    assert jnp.allclose(out.astype(jnp.float32), ew_b, atol=2e-2, rtol=2e-2), \
        "EdgeModel (bf16 out) mismatch vs bf16-exact ref"
    assert jnp.allclose(out_big, ew_b, atol=1e-2, rtol=1e-2), \
        "EdgeModel (f32 out) mismatch vs bf16-exact ref"
    assert jnp.allclose(msg, msg_b, atol=2e-2, rtol=2e-2), \
        "fused NNConv message mismatch vs bf16-exact ref"
    # Loose sanity vs full-f32 math (error comes only from bf16 input/output rounding).
    assert jnp.allclose(out.astype(jnp.float32), ew_ref, atol=5e-2, rtol=5e-2)
    assert jnp.allclose(msg, msg_ref, atol=2e-1, rtol=5e-2)

    print("KERNEL_OK")
</pallas_src>

<mosaic_0001>
module attributes {stable_mosaic.version = 11 : i64} {
  func.func @_edge_model_kernel(%arg0: i32, %arg1: memref<16x8xf32, #tpu.memory_space<vmem>>, %arg2: memref<8x16xbf16, #tpu.memory_space<vmem>>, %arg3: memref<1x16xf32, #tpu.memory_space<vmem>>, %arg4: memref<16x256xbf16, #tpu.memory_space<vmem>>, %arg5: memref<1x256xf32, #tpu.memory_space<vmem>>, %arg6: memref<16x256xbf16, #tpu.memory_space<vmem>>) attributes {dimension_semantics = [#tpu.dimension_semantics<parallel>], iteration_bounds = array<i64: 3>, scalar_prefetch = 0 : i64, scratch_operands = 0 : i64, tpu.core_type = #tpu.core_type<tc>, window_params = [{transform_indices = @transform_0, window_bounds = array<i64: 16, 8>}, {pipeline_mode = #tpu.pipeline_mode<synchronous>, transform_indices = @transform_1, window_bounds = array<i64: 8, 16>}, {pipeline_mode = #tpu.pipeline_mode<synchronous>, transform_indices = @transform_2, window_bounds = array<i64: 1, 16>}, {pipeline_mode = #tpu.pipeline_mode<synchronous>, transform_indices = @transform_3, window_bounds = array<i64: 16, 256>}, {pipeline_mode = #tpu.pipeline_mode<synchronous>, transform_indices = @transform_4, window_bounds = array<i64: 1, 256>}, {transform_indices = @transform_5, window_bounds = array<i64: 16, 256>}]} {
    %c0 = arith.constant 0 : index
    %c0_0 = arith.constant 0 : index
    %0 = vector.load %arg1[%c0, %c0_0] : memref<16x8xf32, #tpu.memory_space<vmem>>, vector<16x8xf32>
    %1 = arith.truncf %0 : vector<16x8xf32> to vector<16x8xbf16>
    %c0_1 = arith.constant 0 : index
    %c0_2 = arith.constant 0 : index
    %2 = vector.load %arg2[%c0_1, %c0_2] : memref<8x16xbf16, #tpu.memory_space<vmem>>, vector<8x16xbf16>
    %cst = arith.constant dense<0.000000e+00> : vector<16x16xf32>
    %3 = tpu.matmul %1, %2, %cst {dimension_numbers = #tpu.dot_dimension_numbers<[1], [0], [0], [1], [0, 0, 1, 1], [], []>} : vector<16x8xbf16>, vector<8x16xbf16>, vector<16x16xf32> -> vector<16x16xf32>
    %c0_3 = arith.constant 0 : index
    %c0_4 = arith.constant 0 : index
    %4 = vector.load %arg3[%c0_3, %c0_4] : memref<1x16xf32, #tpu.memory_space<vmem>>, vector<1x16xf32>
    %5 = vector.broadcast %4 : vector<1x16xf32> to vector<16x16xf32>
    %6 = arith.addf %3, %5 : vector<16x16xf32>
    %7 = math.tanh %6 : vector<16x16xf32>
    %8 = arith.truncf %7 : vector<16x16xf32> to vector<16x16xbf16>
    %c0_5 = arith.constant 0 : index
    %c0_6 = arith.constant 0 : index
    %9 = vector.load %arg4[%c0_5, %c0_6] : memref<16x256xbf16, #tpu.memory_space<vmem>>, vector<16x256xbf16>
    %cst_7 = arith.constant dense<0.000000e+00> : vector<16x256xf32>
    %10 = tpu.matmul %8, %9, %cst_7 {dimension_numbers = #tpu.dot_dimension_numbers<[1], [0], [0], [1], [0, 0, 1, 1], [], []>} : vector<16x16xbf16>, vector<16x256xbf16>, vector<16x256xf32> -> vector<16x256xf32>
    %c0_8 = arith.constant 0 : index
    %c0_9 = arith.constant 0 : index
    %11 = vector.load %arg5[%c0_8, %c0_9] : memref<1x256xf32, #tpu.memory_space<vmem>>, vector<1x256xf32>
    %12 = vector.broadcast %11 : vector<1x256xf32> to vector<16x256xf32>
    %13 = arith.addf %10, %12 : vector<16x256xf32>
    %14 = arith.truncf %13 : vector<16x256xf32> to vector<16x256xbf16>
    %c0_10 = arith.constant 0 : index
    %c0_11 = arith.constant 0 : index
    %15 = vector.load %arg6[%c0_10, %c0_11] : memref<16x256xbf16, #tpu.memory_space<vmem>>, vector<16x256xbf16>
    tpu.vector_store %arg6[%c0_10, %c0_11], %14 {strides = array<i32>} : memref<16x256xbf16, #tpu.memory_space<vmem>>, vector<16x256xbf16>,
    return
  }
  func.func @transform_0(%arg0: i32) -> (i32, i32) {
    %c0_i32 = arith.constant 0 : i32
    %c0_i32_0 = arith.constant 0 : i32
    return %arg0, %c0_i32 : i32, i32
  }
  func.func @transform_1(%arg0: i32) -> (i32, i32) {
    %c0_i32 = arith.constant 0 : i32
    %c0_i32_0 = arith.constant 0 : i32
    %c0_i32_1 = arith.constant 0 : i32
    return %c0_i32, %c0_i32_0 : i32, i32
  }
  func.func @transform_2(%arg0: i32) -> (i32, i32) {
    %c0_i32 = arith.constant 0 : i32
    %c0_i32_0 = arith.constant 0 : i32
    %c0_i32_1 = arith.constant 0 : i32
    return %c0_i32, %c0_i32_0 : i32, i32
  }
  func.func @transform_3(%arg0: i32) -> (i32, i32) {
    %c0_i32 = arith.constant 0 : i32
    %c0_i32_0 = arith.constant 0 : i32
    %c0_i32_1 = arith.constant 0 : i32
    return %c0_i32, %c0_i32_0 : i32, i32
  }
  func.func @transform_4(%arg0: i32) -> (i32, i32) {
    %c0_i32 = arith.constant 0 : i32
    %c0_i32_0 = arith.constant 0 : i32
    %c0_i32_1 = arith.constant 0 : i32
    return %c0_i32, %c0_i32_0 : i32, i32
  }
  func.func @transform_5(%arg0: i32) -> (i32, i32) {
    %c0_i32 = arith.constant 0 : i32
    %c0_i32_0 = arith.constant 0 : i32
    return %arg0, %c0_i32 : i32, i32
  }
}

</mosaic_0001>

<llo_original>
// kernel: tpu_custom_call.1
$region0: #{tpu_custom_call.1}
  #allocation0 [shape = 'u32[]', space=smem, size = 0x4, offset = 0x4, fixed_abs, tag = 'smem constant byte address 0x4 - core index']
  #allocation1 [shape = 'u32[72,128]{1,0:T(1,128)}', space=vmem, size = 0x9000, scoped, tag = 'internal scratch']
  %s0 = inlined_call_operand.vmem [shape: f32[40,8], index: 0, kind: input, shape index: {}]
  %s1 = inlined_call_operand.vmem [shape: bf16[8,16], index: 1, kind: input, shape index: {}]
  %s2 = inlined_call_operand.vmem [shape: f32[1,16], index: 2, kind: input, shape index: {}]
  %s3 = inlined_call_operand.vmem [shape: bf16[16,256], index: 3, kind: input, shape index: {}]
  %s4 = inlined_call_operand.vmem [shape: f32[1,256], index: 4, kind: input, shape index: {}]
  %s5 = inlined_call_operand.hbm [shape: bf16[40,256], index: 5, kind: output, shape index: {}]
  %s6 = sld [smem:[#allocation0]]
  $region53: #{tpu_custom_call.1} parent=0
    _
  %s8 = ssub.s32 1, %s6
  %s9 = scalar_select 0, %s8, %s6
  $region1: #{tpu_custom_call.1} parent=0
    #allocation2 [shape = 'u8[16384]{0}', space=vmem, size = 0x4000, scoped, tag = 'output window, operand 0']
    #allocation3 [shape = 's32[2]{0}', space=sflag, size = 0x8, scoped, tag = 'scoped memory for tpu_custom_call.1']
    %10 = vsyncpa [#allocation3], 0
    %s11 = scalar_lea.sflag [#allocation3], 1
    %12 = vsyncpa %s11, 0
    loop: start=0, step=1, limit=5
    $region2: #{tpu_custom_call.1} parent=1 // loop_pre_header
      _
    $region3: #{tpu_custom_call.1} parent=1 // loop_header
      %s14 = sphi 0, %s18
      %p15 = scmp.ge.s32.totalorder %s14, 5
      %s24 = sphi 0, %s26
      %s27 = sphi 0, %s24
      %s28 = sphi 0, %s27
      %s44 = sphi 0, %s28
      %s48 = sphi 0, %s48
      %s50 = sphi 0, %s48
      %s51 = sphi 0, %s50
      %s65 = sphi 0, %s51
      %s69 = sphi 0, %s69
      %s71 = sphi 0, %s69
      %s72 = sphi 0, %s71
      %s86 = sphi 0, %s72
      %s90 = sphi 0, %s90
      %s92 = sphi 0, %s90
      %s93 = sphi 0, %s92
      %s107 = sphi 0, %s93
      %s111 = sphi 0, %s111
      %s113 = sphi 0, %s111
      %s114 = sphi 0, %s113
      %s128 = sphi 0, %s114
      %s134 = sphi 0, %s136
      %s137 = sphi 0, %s134
      %s138 = sphi 0, %s137
      %s154 = sphi 0, %s138
    $region4: #{tpu_custom_call.1} parent=1 // loop_header_branch
      %17 = sbr.rel (%p15) target = $region8
    $region5: #{tpu_custom_call.1} parent=1 // loop_body
      %s19 = ssub.s32 %s14, 1
      %s20 = ssub.s32 %s14, 2
      %s21 = sadd.s32 %s14, 1
      %s22 = ssub.s32 %s14, %s21
      %p23 = scmp.eq.s32.totalorder %s22, 0
      %s25 = sadd.s32 %s24, 1
      %s26 = scalar_select %p23, %s24, %s25
      %p29 = pneg %p23
      %p30 = scmp.eq.s32.totalorder %s14, 2
      %p31 = por %p29, %p30
      %p32 = scmp.ne.s32.totalorder %s24, %s27
      %p33 = scmp.eq.s32.totalorder %s14, 0
      %p34 = por %p32, %p33
      %p35 = scmp.ne.s32.totalorder %s24, %s27
      %p36 = scmp.eq.s32.totalorder %s19, 2
      %p37 = por %p35, %p36
      %p38 = scmp.ne.s32.totalorder %s27, %s28
      %p39 = scmp.eq.s32.totalorder %s19, 0
      %p40 = por %p38, %p39
      %p41 = scmp.ne.s32.totalorder %s27, %s28
      %p42 = scmp.eq.s32.totalorder %s20, 2
      %p43 = por %p41, %p42
      %p45 = scmp.ne.s32.totalorder %s28, %s44
      %p46 = scmp.eq.s32.totalorder %s20, 0
      %p47 = por %p45, %p46
      %s49 = sadd.s32 %s48, 1
      %p52 = scmp.eq.s32.totalorder %s14, 2
      %p53 = scmp.ne.s32.totalorder %s48, %s50
      %p54 = scmp.eq.s32.totalorder %s14, 0
      %p55 = por %p53, %p54
      %p56 = scmp.ne.s32.totalorder %s48, %s50
      %p57 = scmp.eq.s32.totalorder %s19, 2
      %p58 = por %p56, %p57
      %p59 = scmp.ne.s32.totalorder %s50, %s51
      %p60 = scmp.eq.s32.totalorder %s19, 0
      %p61 = por %p59, %p60
      %p62 = scmp.ne.s32.totalorder %s50, %s51
      %p63 = scmp.eq.s32.totalorder %s20, 2
      %p64 = por %p62, %p63
      %p66 = scmp.ne.s32.totalorder %s51, %s65
      %p67 = scmp.eq.s32.totalorder %s20, 0
      %p68 = por %p66, %p67
      %s70 = sadd.s32 %s69, 1
      %p73 = scmp.eq.s32.totalorder %s14, 2
      %p74 = scmp.ne.s32.totalorder %s69, %s71
      %p75 = scmp.eq.s32.totalorder %s14, 0
      %p76 = por %p74, %p75
      %p77 = scmp.ne.s32.totalorder %s69, %s71
      %p78 = scmp.eq.s32.totalorder %s19, 2
      %p79 = por %p77, %p78
      %p80 = scmp.ne.s32.totalorder %s71, %s72
      %p81 = scmp.eq.s32.totalorder %s19, 0
      %p82 = por %p80, %p81
      %p83 = scmp.ne.s32.totalorder %s71, %s72
      %p84 = scmp.eq.s32.totalorder %s20, 2
      %p85 = por %p83, %p84
      %p87 = scmp.ne.s32.totalorder %s72, %s86
      %p88 = scmp.eq.s32.totalorder %s20, 0
      %p89 = por %p87, %p88
      %s91 = sadd.s32 %s90, 1
      %p94 = scmp.eq.s32.totalorder %s14, 2
      %p95 = scmp.ne.s32.totalorder %s90, %s92
      %p96 = scmp.eq.s32.totalorder %s14, 0
      %p97 = por %p95, %p96
      %p98 = scmp.ne.s32.totalorder %s90, %s92
      %p99 = scmp.eq.s32.totalorder %s19, 2
      %p100 = por %p98, %p99
      %p101 = scmp.ne.s32.totalorder %s92, %s93
      %p102 = scmp.eq.s32.totalorder %s19, 0
      %p103 = por %p101, %p102
      %p104 = scmp.ne.s32.totalorder %s92, %s93
      %p105 = scmp.eq.s32.totalorder %s20, 2
      %p106 = por %p104, %p105
      %p108 = scmp.ne.s32.totalorder %s93, %s107
      %p109 = scmp.eq.s32.totalorder %s20, 0
      %p110 = por %p108, %p109
      %s112 = sadd.s32 %s111, 1
      %p115 = scmp.eq.s32.totalorder %s14, 2
      %p116 = scmp.ne.s32.totalorder %s111, %s113
      %p117 = scmp.eq.s32.totalorder %s14, 0
      %p118 = por %p116, %p117
      %p119 = scmp.ne.s32.totalorder %s111, %s113
      %p120 = scmp.eq.s32.totalorder %s19, 2
      %p121 = por %p119, %p120
      %p122 = scmp.ne.s32.totalorder %s113, %s114
      %p123 = scmp.eq.s32.totalorder %s19, 0
      %p124 = por %p122, %p123
      %p125 = scmp.ne.s32.totalorder %s113, %s114
      %p126 = scmp.eq.s32.totalorder %s20, 2
      %p127 = por %p125, %p126
      %p129 = scmp.ne.s32.totalorder %s114, %s128
      %p130 = scmp.eq.s32.totalorder %s20, 0
      %p131 = por %p129, %p130
      %s132 = ssub.s32 %s14, %s21
      %p133 = scmp.eq.s32.totalorder %s132, 0
      %s135 = sadd.s32 %s134, 1
      %s136 = scalar_select %p133, %s134, %s135
      %p139 = pneg %p133
      %p140 = scmp.eq.s32.totalorder %s14, 2
      %p141 = por %p139, %p140
      %p142 = scmp.ne.s32.totalorder %s134, %s137
      %p143 = scmp.eq.s32.totalorder %s14, 0
      %p144 = por %p142, %p143
      %p145 = scmp.ne.s32.totalorder %s134, %s137
      %p146 = scmp.eq.s32.totalorder %s19, 2
      %p147 = por %p145, %p146
      %p148 = scmp.ne.s32.totalorder %s137, %s138
      %p149 = scmp.eq.s32.totalorder %s19, 0
      %p150 = por %p148, %p149
      %p151 = scmp.ne.s32.totalorder %s137, %s138
      %p152 = scmp.eq.s32.totalorder %s20, 2
      %p153 = por %p151, %p152
      %p155 = scmp.ne.s32.totalorder %s138, %s154
      %p156 = scmp.eq.s32.totalorder %s20, 0
      %p157 = por %p155, %p156
      %p158 = scmp.le.s32.totalorder 1, %s14
      %p159 = scmp.lt.s32.totalorder %s14, 4
      %p160 = pnand %p158, %p159
      %p161 = pneg %p160
      // Predicated region
      $region9: #{tpu_custom_call.1} parent=5 // pred_check
        _
      $region10: #{tpu_custom_call.1} parent=5 // pred_check_branch
        %163 = sbr.rel (%p160) target = $region12
      $region11: #{tpu_custom_call.1} parent=5 // pred_region
        %s164 = ssub.s32 %s14, 1
        // Predicated region
        $region13: #{tpu_custom_call.1} parent=11 // pred_check
          %p165 = pneg %p61
        $region14: #{tpu_custom_call.1} parent=11 // pred_check_branch
          %167 = sbr.rel (%p165) target = $region16
        $region15: #{tpu_custom_call.1} parent=11 // pred_region
          _
        $region16: #{tpu_custom_call.1} parent=11 // pred_fallthru
          _
        // Predicated region
        $region17: #{tpu_custom_call.1} parent=11 // pred_check
          %p168 = pneg %p82
        $region18: #{tpu_custom_call.1} parent=11 // pred_check_branch
          %170 = sbr.rel (%p168) target = $region20
        $region19: #{tpu_custom_call.1} parent=11 // pred_region
          _
        $region20: #{tpu_custom_call.1} parent=11 // pred_fallthru
          _
        // Predicated region
        $region21: #{tpu_custom_call.1} parent=11 // pred_check
          %p171 = pneg %p103
        $region22: #{tpu_custom_call.1} parent=11 // pred_check_branch
          %173 = sbr.rel (%p171) target = $region24
        $region23: #{tpu_custom_call.1} parent=11 // pred_region
          _
        $region24: #{tpu_custom_call.1} parent=11 // pred_fallthru
          _
        // Predicated region
        $region25: #{tpu_custom_call.1} parent=11 // pred_check
          %p174 = pneg %p124
        $region26: #{tpu_custom_call.1} parent=11 // pred_check_branch
          %176 = sbr.rel (%p174) target = $region28
        $region27: #{tpu_custom_call.1} parent=11 // pred_region
          _
        $region28: #{tpu_custom_call.1} parent=11 // pred_fallthru
          _
      $region12: #{tpu_custom_call.1} parent=5 // pred_fallthru
        _
      %p177 = scmp.lt.s32.totalorder %s14, 3
      // Predicated region
      $region29: #{tpu_custom_call.1} parent=5 // pred_check
        %p178 = pneg %p177
      $region30: #{tpu_custom_call.1} parent=5 // pred_check_branch
        %180 = sbr.rel (%p178) target = $region32
      $region31: #{tpu_custom_call.1} parent=5 // pred_region
        // Predicated region
        $region33: #{tpu_custom_call.1} parent=31 // pred_check
          %p181 = pneg %p34
        $region34: #{tpu_custom_call.1} parent=31 // pred_check_branch
          %183 = sbr.rel (%p181) target = $region36
        $region35: #{tpu_custom_call.1} parent=31 // pred_region
          %s184 = smul.u32 2, %s14
          %s185 = ssub.s32 5, %s184
          %p186 = scmp.lt.s32.totalorder %s185, 2
          %s187 = scalar_select %p186, %s185, 2
          %s188 = smul.u32 8, %s187
          %p189 = scmp.lt.s32.totalorder %s184, 4
          %s190 = scalar_select %p189, %s184, 4
          %s191 = smul.addr %s190, 8
          %s192 = scalar_lea.vmem %s0, %s191
          %s193 = smul.u32 2, %s14
          %s194 = ssub.s32 5, %s193
          %p195 = scmp.lt.s32.totalorder %s194, 2
          %s196 = scalar_select %p195, %s194, 2
          %s197 = smul.u32 8, %s196
        $region36: #{tpu_custom_call.1} parent=31 // pred_fallthru
          _
      $region32: #{tpu_custom_call.1} parent=5 // pred_fallthru
        _
      %p198 = scmp.le.s32.totalorder 1, %s14
      %p199 = scmp.lt.s32.totalorder %s14, 4
      %p200 = pnand %p198, %p199
      %p201 = pneg %p200
      // Predicated region
      $region37: #{tpu_custom_call.1} parent=5 // pred_check
        _
      $region38: #{tpu_custom_call.1} parent=5 // pred_check_branch
        %203 = sbr.rel (%p200) target = $region40
      $region39: #{tpu_custom_call.1} parent=5 // pred_region
        %s204 = ssub.s32 %s14, 1
        %s205 = smul.u32 2, %s19
        %s206 = ssub.s32 5, %s205
        %p207 = scmp.lt.s32.totalorder %s206, 2
        %s208 = scalar_select %p207, %s206, 2
        %s209 = smul.u32 8, %s208
        %p210 = scmp.lt.s32.totalorder %s205, 4
        %s211 = scalar_select %p210, %s205, 4
        %s212 = smul.addr %s211, 8
        %s213 = scalar_lea.vmem %s0, %s212
        %p214 = pneg %p40
        %p215 = pneg %p37
        %p216 = pneg %p61
        %p217 = pneg %p58
        %p218 = pneg %p82
        %p219 = pneg %p79
        %p220 = pneg %p103
        %p221 = pneg %p100
        %p222 = pneg %p124
        %p223 = pneg %p121
        %p224 = pneg %p150
        %p225 = pneg %p147
        %s226 = sand.u32 %s137, 1
        %s227 = scalar_lea.sflag [#allocation3], %s226
        %s228 = sand.u32 %s137, 1
        %s229 = smul.addr %s228, 16
        %s230 = scalar_lea.vmem [#allocation2], %s229
        %s231 = smul.u32 2, %s19
        %s232 = ssub.s32 5, %s231
        %p233 = scmp.lt.s32.totalorder %s232, 2
        %s234 = scalar_select %p233, %s232, 2
        %s235 = smul.u32 8, %s234
        %p236 = scmp.lt.s32.totalorder %s231, 4
        %s237 = scalar_select %p236, %s231, 4
        %s238 = smul.addr %s237, 8
        %s239 = scalar_lea.vmem %s0, %s238
        %s240 = smul.u32 2, %s19
        %s241 = ssub.s32 5, %s240
        %p242 = scmp.lt.s32.totalorder %s241, 2
        %s243 = scalar_select %p242, %s241, 2
        %s244 = smul.u32 8, %s243
        %s245 = smul.u32 2, %s19
        %s246 = ssub.s32 5, %s245
        %p247 = scmp.lt.s32.totalorder %s246, 2
        %s248 = scalar_select %p247, %s246, 2
        %s249 = smul.u32 4, %s248
        %s250 = smul.u32 %s249, 2
        %v252 = vld [vmem:[%s239] sm:$0xff]
        %v253 = vld [vmem:[%s239 + $0x8] sm:$0xff]
        %v254 = vpack.c.bf16 %v253, %v252
        %v255 = vld [vmem:[%s1] sm:$0xf]
        %v256 = vld [vmem:[%s2] sm:$0x1]
        %v258 = vperm.slane %v256, 0
        %vm260 = vcmask 64512
        %v262 = vsel %vm260, %v254, 0
        %vm264 = vcmask 1043456
        %v266 = vsel %vm264, %v255, 0
        %268 = vmatpush.bf16.msra.mxu0 0
        %269 = vmatpush.bf16.msra.mxu0 0
        %270 = vmatpush.bf16.msra.mxu0 0
        %271 = vmatpush.bf16.msra.mxu0 0
        %272 = vmatpush.bf16.msra.mxu0 0
        %273 = vmatpush.bf16.msra.mxu0 0
        %274 = vmatpush.bf16.msra.mxu0 0
        %275 = vmatpush.bf16.msra.mxu0 %v266
        %276 = vmatmul.bf16.gmra.mxu0 %v262
        %v277 = vpop.f32.mrf.mxu0
        %v278 = vadd.f32 %v258, %v277
        %v279 = vpop.f32.mrf.mxu0
        %v280 = vadd.f32 %v258, %v279
        %281 = vdwg.mxu0
        %v282 = vtanh.pop %v278
        %v283 = vtanh.pop %v280
        %v284 = vpack.c.bf16 %v283, %v282
        %v285 = vld [vmem:[%s3] sm:$0xff]
        %v286 = vld [vmem:[%s3 + $0x8] sm:$0xff]
        %v287 = vld [vmem:[%s4] sm:$0x3]
        %v289 = vperm.slane %v287, 0
        %v290 = vperm.slane %v287, 1
        %v295 = vunpack.c.l.b16 %v285
        %v296 = vunpack.c.h.b16 %v285
        %v297 = vunpack.c.l.b16 %v286
        %v298 = vunpack.c.h.b16 %v286
        %v299 = vpack.c.b16 %v297, %v295
        %v300 = vpack.c.b16 %v298, %v296
        %vm303 = vcmask 130048
        %v305 = vsel %vm303, %v284, 0
        %307 = vmatpush.bf16.msra.mxu0 0
        %308 = vmatpush.bf16.msra.mxu0 0
        %309 = vmatpush.bf16.msra.mxu0 0
        %310 = vmatpush.bf16.msra.mxu0 0
        %311 = vmatpush.bf16.msra.mxu0 0
        %312 = vmatpush.bf16.msra.mxu0 0
        %313 = vmatpush.bf16.msra.mxu0 0
        %314 = vmatpush.bf16.msra.mxu0 %v299
        %315 = vmatmul.bf16.gmra.mxu0 %v305
        %v316 = vpop.f32.mrf.mxu0
        %v317 = vadd.f32 %v289, %v316
        %v318 = vpop.f32.mrf.mxu0
        %v319 = vadd.f32 %v289, %v318
        %320 = vdwg.mxu0
        %321 = vmatpush.bf16.msra.mxu0 0
        %322 = vmatpush.bf16.msra.mxu0 0
        %323 = vmatpush.bf16.msra.mxu0 0
        %324 = vmatpush.bf16.msra.mxu0 0
        %325 = vmatpush.bf16.msra.mxu0 0
        %326 = vmatpush.bf16.msra.mxu0 0
        %327 = vmatpush.bf16.msra.mxu0 0
        %328 = vmatpush.bf16.msra.mxu0 %v300
        %329 = vmatmul.bf16.gmra.mxu0 %v305
        %v330 = vpop.f32.mrf.mxu0
        %v331 = vadd.f32 %v290, %v330
        %v332 = vpop.f32.mrf.mxu0
        %v333 = vadd.f32 %v290, %v332
        %334 = vdwg.mxu0
        %v335 = vpack.c.bf16 %v331, %v317
        %v336 = vpack.c.bf16 %v333, %v319
        %337 = vst [vmem:[%s230] sm:$0xff] %v335
        %338 = vst [vmem:[%s230 + $0x8] sm:$0xff] %v336
        %s339 = sand.u32 %s137, 1
        %s340 = scalar_lea.sflag [#allocation3], %s339
        %s341 = sand.u32 %s137, 1
        %s342 = smul.addr %s341, 16
        %s343 = scalar_lea.vmem [#allocation2], %s342
        // Predicated region
        $region41: #{tpu_custom_call.1} parent=39 // pred_check
          %p344 = pneg %p147
        $region42: #{tpu_custom_call.1} parent=39 // pred_check_branch
          %346 = sbr.rel (%p344) target = $region44
        $region43: #{tpu_custom_call.1} parent=39 // pred_region
          %s347 = smul.u32 2, %s19
          %s348 = ssub.s32 5, %s347
          %p349 = scmp.lt.s32.totalorder %s348, 2
          %s350 = scalar_select %p349, %s348, 2
          %s351 = smul.u32 4, %s350
          %s352 = smul.u32 %s351, 2
          %s353 = ssub.s32 16, %s352
          %s354 = sshll.u32 %s353, 4
          %355 = vsyncadd %s340, %s354
          %p356 = scmp.ne.s32.totalorder 0, %s352
          %s357 = smul.addr %s347, 2
          %s358 = smul.addr %s357, 4
          %s359 = scalar_lea.hbm %s5, %s358
          %s360 = smul.u32 8, %s350
          %s361 = sshll.u32 %s343, 4
          %s362 = int_to_ptr.vmem [resolvable:$true] %s361
          %s363 = sshll.u32 %s359, 4
          %s364 = int_to_ptr.hbm [resolvable:$true] %s363
          %s365 = sshll.u32 %s360, 4
          %369 = dma.vmem_to_hbm [thread:$0]  (%p356), %s362, %s365, %s364, %s340, 128, 128, 8
        $region44: #{tpu_custom_call.1} parent=39 // pred_fallthru
          _
      $region40: #{tpu_custom_call.1} parent=5 // pred_fallthru
        _
      %p370 = scmp.le.s32.totalorder 2, %s14
      // Predicated region
      $region45: #{tpu_custom_call.1} parent=5 // pred_check
        %p371 = pneg %p370
      $region46: #{tpu_custom_call.1} parent=5 // pred_check_branch
        %373 = sbr.rel (%p371) target = $region48
      $region47: #{tpu_custom_call.1} parent=5 // pred_region
        %s374 = ssub.s32 %s14, 2
        // Predicated region
        $region49: #{tpu_custom_call.1} parent=47 // pred_check
          %p375 = pneg %p153
        $region50: #{tpu_custom_call.1} parent=47 // pred_check_branch
          %377 = sbr.rel (%p375) target = $region52
        $region51: #{tpu_custom_call.1} parent=47 // pred_region
          %s378 = sand.u32 %s138, 1
          %s379 = scalar_lea.sflag [#allocation3], %s378
          %s380 = sand.u32 %s138, 1
          %s381 = smul.addr %s380, 16
          %s382 = scalar_lea.vmem [#allocation2], %s381
          %384 = dma.done %s379, 256
        $region52: #{tpu_custom_call.1} parent=47 // pred_fallthru
          _
      $region48: #{tpu_custom_call.1} parent=5 // pred_fallthru
        _
    $region6: #{tpu_custom_call.1} parent=1 // loop_footer
      %s18 = sadd.s32 1, %s14
    $region7: #{tpu_custom_call.1} parent=1 // loop_footer_branch
      %13 = sbr.rel target = $region3
    $region8: #{tpu_custom_call.1} parent=1 // loop_exit
      _
    %385 = vsyncpa [#allocation3], 1
    %s386 = scalar_lea.sflag [#allocation3], 1
    %387 = vsyncpa %s386, 1

</llo_original>
